<compile_context>
chip_gen: v7x
topology: tpu7x:2x2x1
jax: 0.10.0
libtpu: 0.0.40
codegen_flags: <defaults>
</compile_context>

<pallas_src>
import jax
import jax.numpy as jnp
from jax.experimental import pallas as pl
from jax.experimental.pallas import tpu as pltpu

_LN_EPS = 1e-5  # PyTorch nn.LayerNorm default
_VMEM_BUDGET = 40 * 1024 * 1024  # conservative working-set cap (fits v7x's 64 MiB)


def _patch_embed_kernel(x_ref, w_ref, b_ref, g_ref, beta_ref, o_ref):
    # x_ref: (TM, K) bf16 im2col rows; w_ref: (K, E) bf16; b/g/beta: (1, E) f32.
    y = jnp.dot(x_ref[...], w_ref[...], preferred_element_type=jnp.float32)  # MXU, f32 acc
    y = y + b_ref[0]
    # One traversal of y for both LayerNorm statistics (var = E[y^2] - mu^2).
    inv_e = 1.0 / y.shape[-1]
    mu = jnp.sum(y, axis=-1, keepdims=True) * inv_e
    ms = jnp.sum(y * y, axis=-1, keepdims=True) * inv_e
    var = jnp.maximum(ms - mu * mu, 0.0)
    inv_sigma = jax.lax.rsqrt(var + _LN_EPS)  # EUP slot, not VALU
    # normalize + affine + cast fused into the single output store (bf16).
    o_ref[...] = ((y - mu) * inv_sigma * g_ref[0] + beta_ref[0]).astype(o_ref.dtype)


def _working_set_bytes(tm, K, E, out_bytes):
    return (2 * tm * K * 2            # double-buffered bf16 input rows
            + 2 * tm * E * out_bytes  # double-buffered output tile
            + 2 * K * E * 2           # projection weight (budgeted at 2 buffers)
            + tm * E * 4              # f32 matmul / LN temporary
            + 8 * E * 4)              # bias / gamma / beta


def _choose_row_tile(m, K, E, out_bytes):
    """Largest MXU/pipeline-friendly row tile dividing m with >=2 steps and a
    VMEM-safe working set; prefer an even step count (v7x has 2 TensorCores)."""
    valid = [tm for tm in (2048, 1024, 512, 256, 128, 64, 32, 16, 8)
             if tm <= m and m % tm == 0 and m // tm >= 2
             and _working_set_bytes(tm, K, E, out_bytes) <= _VMEM_BUDGET]
    if not valid:
        return m
    even = [tm for tm in valid if (m // tm) % 2 == 0]
    return even[0] if even else valid[0]


def _build_call(m_pad, tm, K, E, out_dtype, vmem_limit, advanced):
    def const_spec(shape):
        if advanced:
            # Grid-invariant operand: single buffer reclaims VMEM headroom.
            return pl.BlockSpec(shape, lambda i: (0, 0), pipeline_mode=pl.Buffered(1))
        return pl.BlockSpec(shape, lambda i: (0, 0))

    ckwargs = dict(dimension_semantics=("parallel",), vmem_limit_bytes=vmem_limit)
    if advanced:
        # Allow XLA to fuse the im2col transpose/cast producer into the input DMA.
        ckwargs["allow_input_fusion"] = [True, False, False, False, False]

    return pl.pallas_call(
        _patch_embed_kernel,
        out_shape=jax.ShapeDtypeStruct((m_pad, E), out_dtype),
        grid_spec=pltpu.PrefetchScalarGridSpec(
            num_scalar_prefetch=0,
            grid=(m_pad // tm,),
            in_specs=[
                pl.BlockSpec((tm, K), lambda i: (i, 0)),      # im2col patch rows
                const_spec((K, E)),                           # projection weight (resident)
                const_spec((1, E)),                           # conv bias
                const_spec((1, E)),                           # LN gamma
                const_spec((1, E)),                           # LN beta
            ],
            out_specs=pl.BlockSpec((tm, E), lambda i: (i, 0)),  # lane-dense output slab
        ),
        compiler_params=pltpu.CompilerParams(**ckwargs),
    )


def patch_embed(x, conv_w, conv_b, ln_g, ln_b, *, patch_size=(4, 4),
                out_dtype=jnp.bfloat16):
    """x: (B, T, Cin, H, W).  conv_w: (E, Cin, ph, pw).  Returns ((B, T*Hp*Wp, E), out_size)."""
    B, T, Cin, H, W = x.shape
    ph, pw = patch_size
    E = conv_w.shape[0]
    Hp, Wp = H // ph, W // pw
    K = Cin * ph * pw
    M = B * T * Hp * Wp

    # im2col is pure layout (zero FLOPs): rows ordered (b, t, h, w); columns
    # ordered (c, ph, pw) to match the Conv2d weight layout (E, Cin, ph, pw).
    # transpose + bf16 cast (+ pad) form a single XLA fusion; with
    # allow_input_fusion the producer folds into the Pallas input DMA.
    xp = x.reshape(B * T, Cin, Hp, ph, Wp, pw)
    xp = xp.transpose(0, 2, 4, 1, 3, 5).reshape(M, K).astype(jnp.bfloat16)

    wm = conv_w.reshape(E, K).T.astype(jnp.bfloat16)  # (K, E), bf16 MXU operand
    bm = conv_b.reshape(1, E).astype(jnp.float32)
    gm = ln_g.reshape(1, E).astype(jnp.float32)
    bt = ln_b.reshape(1, E).astype(jnp.float32)

    # Only pad rows to the sublane multiple (8) — never to the tile size — so
    # the post-kernel un-pad slice stays a no-op for realistic shapes.
    m_pad = ((M + 7) // 8) * 8
    if m_pad != M:
        xp = jnp.pad(xp, ((0, m_pad - M), (0, 0)))

    out_bytes = jnp.dtype(out_dtype).itemsize
    tm = _choose_row_tile(m_pad, K, E, out_bytes)
    vmem_limit = max(32 * 1024 * 1024,
                     min(_working_set_bytes(tm, K, E, out_bytes) + 8 * 1024 * 1024,
                         56 * 1024 * 1024))

    args = (xp, wm, bm, gm, bt)
    try:
        out = _build_call(m_pad, tm, K, E, out_dtype, vmem_limit, advanced=True)(*args)
        out = jax.block_until_ready(out)
    except Exception:
        # Fallback: identical kernel without the input-fusion / single-buffer hints.
        out = _build_call(m_pad, tm, K, E, out_dtype, vmem_limit, advanced=False)(*args)

    out = out[:M].reshape(B, T * Hp * Wp, E)
    out_size = (H * T // ph, W // pw)   # matches the PyTorch module's contract
    return out, out_size


def _reference(x, conv_w, conv_b, ln_g, ln_b, *, patch_size=(4, 4)):
    """Pure-JAX reference mirroring the PyTorch forward (real conv path, f32)."""
    B, T, Cin, H, W = x.shape
    ph, pw = patch_size
    E = conv_w.shape[0]
    Hp, Wp = H // ph, W // pw
    y = jax.lax.conv_general_dilated(
        x.reshape(B * T, Cin, H, W), conv_w, window_strides=(ph, pw),
        padding="VALID", dimension_numbers=("NCHW", "OIHW", "NCHW"))
    y = y + conv_b.reshape(1, E, 1, 1)
    # rearrange '(b t) c h w -> b (t h w) c'
    y = y.reshape(B, T, E, Hp, Wp).transpose(0, 1, 3, 4, 2).reshape(B, T * Hp * Wp, E)
    mu = jnp.mean(y, -1, keepdims=True)
    var = jnp.mean((y - mu) ** 2, -1, keepdims=True)
    return (y - mu) / jnp.sqrt(var + _LN_EPS) * ln_g + ln_b


if __name__ == "__main__":
    # Small shapes consistent with the module: video tokens (B, T, Cin, H, W),
    # patch 4x4, embed_dim kept lane-dense (multiple of 128).
    B, T, Cin, H, W = 2, 2, 3, 16, 16
    patch = (4, 4)
    E = 128

    key = jax.random.PRNGKey(0)
    k1, k2, k3 = jax.random.split(key, 3)
    x = jax.random.normal(k1, (B, T, Cin, H, W), jnp.float32)
    conv_w = (0.02 * jax.random.normal(k2, (E, Cin, patch[0], patch[1]))).astype(jnp.float32)
    conv_b = (0.02 * jax.random.normal(k3, (E,))).astype(jnp.float32)
    ln_g = jnp.ones((E,), jnp.float32)
    ln_b = jnp.zeros((E,), jnp.float32)

    out, out_size = patch_embed(x, conv_w, conv_b, ln_g, ln_b, patch_size=patch)
    out = jax.block_until_ready(out)

    ref = _reference(x, conv_w, conv_b, ln_g, ln_b, patch_size=patch)
    assert out.shape == (B, T * (H // patch[0]) * (W // patch[1]), E)
    assert out_size == (H * T // patch[0], W // patch[1])
    # bf16 MXU operands + bf16 output vs f32 reference -> loose tolerance.
    assert jnp.allclose(out.astype(jnp.float32), ref, atol=4e-2, rtol=4e-2), \
        "mismatch vs reference"

    print("KERNEL_OK")
</pallas_src>

<mosaic_0001>
module attributes {stable_mosaic.version = 11 : i64} {
  func.func @_patch_embed_kernel(%arg0: i32, %arg1: memref<32x48xbf16, #tpu.memory_space<vmem>>, %arg2: memref<48x128xbf16, #tpu.memory_space<vmem>>, %arg3: memref<1x128xf32, #tpu.memory_space<vmem>>, %arg4: memref<1x128xf32, #tpu.memory_space<vmem>>, %arg5: memref<1x128xf32, #tpu.memory_space<vmem>>, %arg6: memref<32x128xbf16, #tpu.memory_space<vmem>>) attributes {dimension_semantics = [#tpu.dimension_semantics<parallel>], iteration_bounds = array<i64: 2>, scalar_prefetch = 0 : i64, scratch_operands = 0 : i64, tpu.core_type = #tpu.core_type<tc>, window_params = [{transform_indices = @transform_0, window_bounds = array<i64: 32, 48>}, {pipeline_mode = #tpu.pipeline_mode<synchronous>, transform_indices = @transform_1, window_bounds = array<i64: 48, 128>}, {pipeline_mode = #tpu.pipeline_mode<synchronous>, transform_indices = @transform_2, window_bounds = array<i64: 1, 128>}, {pipeline_mode = #tpu.pipeline_mode<synchronous>, transform_indices = @transform_3, window_bounds = array<i64: 1, 128>}, {pipeline_mode = #tpu.pipeline_mode<synchronous>, transform_indices = @transform_4, window_bounds = array<i64: 1, 128>}, {transform_indices = @transform_5, window_bounds = array<i64: 32, 128>}]} {
    %c0 = arith.constant 0 : index
    %c0_0 = arith.constant 0 : index
    %0 = vector.load %arg1[%c0, %c0_0] : memref<32x48xbf16, #tpu.memory_space<vmem>>, vector<32x48xbf16>
    %c0_1 = arith.constant 0 : index
    %c0_2 = arith.constant 0 : index
    %1 = vector.load %arg2[%c0_1, %c0_2] : memref<48x128xbf16, #tpu.memory_space<vmem>>, vector<48x128xbf16>
    %cst = arith.constant dense<0.000000e+00> : vector<32x128xf32>
    %2 = tpu.matmul %0, %1, %cst {dimension_numbers = #tpu.dot_dimension_numbers<[1], [0], [0], [1], [0, 0, 1, 1], [], []>} : vector<32x48xbf16>, vector<48x128xbf16>, vector<32x128xf32> -> vector<32x128xf32>
    %c0_3 = arith.constant 0 : index
    %c0_4 = arith.constant 0 : index
    %3 = vector.load %arg3[%c0_3, %c0_4] : memref<1x128xf32, #tpu.memory_space<vmem>>, vector<1x128xf32>
    %4 = vector.shape_cast %3 : vector<1x128xf32> to vector<128xf32>
    %5 = vector.shape_cast %4 : vector<128xf32> to vector<1x128xf32>
    %6 = vector.broadcast %5 : vector<1x128xf32> to vector<32x128xf32>
    %7 = arith.addf %2, %6 : vector<32x128xf32>
    %cst_5 = arith.constant dense<0.000000e+00> : vector<32xf32>
    %8 = vector.multi_reduction <add>, %7, %cst_5 [1] : vector<32x128xf32> to vector<32xf32>
    %9 = vector.shape_cast %8 : vector<32xf32> to vector<32x1xf32>
    %cst_6 = arith.constant 7.812500e-03 : f32
    %10 = vector.broadcast %cst_6 : f32 to vector<32x1xf32>
    %11 = arith.mulf %9, %10 : vector<32x1xf32>
    %12 = arith.mulf %7, %7 : vector<32x128xf32>
    %cst_7 = arith.constant dense<0.000000e+00> : vector<32xf32>
    %13 = vector.multi_reduction <add>, %12, %cst_7 [1] : vector<32x128xf32> to vector<32xf32>
    %14 = vector.shape_cast %13 : vector<32xf32> to vector<32x1xf32>
    %cst_8 = arith.constant 7.812500e-03 : f32
    %15 = vector.broadcast %cst_8 : f32 to vector<32x1xf32>
    %16 = arith.mulf %14, %15 : vector<32x1xf32>
    %17 = arith.mulf %11, %11 : vector<32x1xf32>
    %18 = arith.subf %16, %17 : vector<32x1xf32>
    %cst_9 = arith.constant 0.000000e+00 : f32
    %19 = vector.broadcast %cst_9 : f32 to vector<32x1xf32>
    %20 = arith.maximumf %18, %19 : vector<32x1xf32>
    %cst_10 = arith.constant 9.99999974E-6 : f32
    %21 = vector.broadcast %cst_10 : f32 to vector<32x1xf32>
    %22 = arith.addf %20, %21 : vector<32x1xf32>
    %23 = math.rsqrt %22 : vector<32x1xf32>
    %24 = vector.broadcast %11 : vector<32x1xf32> to vector<32x128xf32>
    %25 = arith.subf %7, %24 : vector<32x128xf32>
    %26 = vector.broadcast %23 : vector<32x1xf32> to vector<32x128xf32>
    %27 = arith.mulf %25, %26 : vector<32x128xf32>
    %c0_11 = arith.constant 0 : index
    %c0_12 = arith.constant 0 : index
    %28 = vector.load %arg4[%c0_11, %c0_12] : memref<1x128xf32, #tpu.memory_space<vmem>>, vector<1x128xf32>
    %29 = vector.shape_cast %28 : vector<1x128xf32> to vector<128xf32>
    %30 = vector.shape_cast %29 : vector<128xf32> to vector<1x128xf32>
    %31 = vector.broadcast %30 : vector<1x128xf32> to vector<32x128xf32>
    %32 = arith.mulf %27, %31 : vector<32x128xf32>
    %c0_13 = arith.constant 0 : index
    %c0_14 = arith.constant 0 : index
    %33 = vector.load %arg5[%c0_13, %c0_14] : memref<1x128xf32, #tpu.memory_space<vmem>>, vector<1x128xf32>
    %34 = vector.shape_cast %33 : vector<1x128xf32> to vector<128xf32>
    %35 = vector.shape_cast %34 : vector<128xf32> to vector<1x128xf32>
    %36 = vector.broadcast %35 : vector<1x128xf32> to vector<32x128xf32>
    %37 = arith.addf %32, %36 : vector<32x128xf32>
    %38 = arith.truncf %37 : vector<32x128xf32> to vector<32x128xbf16>
    %c0_15 = arith.constant 0 : index
    %c0_16 = arith.constant 0 : index
    %39 = vector.load %arg6[%c0_15, %c0_16] : memref<32x128xbf16, #tpu.memory_space<vmem>>, vector<32x128xbf16>
    tpu.vector_store %arg6[%c0_15, %c0_16], %38 {strides = array<i32>} : memref<32x128xbf16, #tpu.memory_space<vmem>>, vector<32x128xbf16>,
    return
  }
  func.func @transform_0(%arg0: i32) -> (i32, i32) {
    %c0_i32 = arith.constant 0 : i32
    %c0_i32_0 = arith.constant 0 : i32
    return %arg0, %c0_i32 : i32, i32
  }
  func.func @transform_1(%arg0: i32) -> (i32, i32) {
    %c0_i32 = arith.constant 0 : i32
    %c0_i32_0 = arith.constant 0 : i32
    %c0_i32_1 = arith.constant 0 : i32
    return %c0_i32, %c0_i32_0 : i32, i32
  }
  func.func @transform_2(%arg0: i32) -> (i32, i32) {
    %c0_i32 = arith.constant 0 : i32
    %c0_i32_0 = arith.constant 0 : i32
    %c0_i32_1 = arith.constant 0 : i32
    return %c0_i32, %c0_i32_0 : i32, i32
  }
  func.func @transform_3(%arg0: i32) -> (i32, i32) {
    %c0_i32 = arith.constant 0 : i32
    %c0_i32_0 = arith.constant 0 : i32
    %c0_i32_1 = arith.constant 0 : i32
    return %c0_i32, %c0_i32_0 : i32, i32
  }
  func.func @transform_4(%arg0: i32) -> (i32, i32) {
    %c0_i32 = arith.constant 0 : i32
    %c0_i32_0 = arith.constant 0 : i32
    %c0_i32_1 = arith.constant 0 : i32
    return %c0_i32, %c0_i32_0 : i32, i32
  }
  func.func @transform_5(%arg0: i32) -> (i32, i32) {
    %c0_i32 = arith.constant 0 : i32
    %c0_i32_0 = arith.constant 0 : i32
    return %arg0, %c0_i32 : i32, i32
  }
}

module attributes {stable_mosaic.version = 11 : i64} {
  func.func @_patch_embed_kernel(%arg0: i32, %arg1: memref<32x48xbf16, #tpu.memory_space<vmem>>, %arg2: memref<48x128xbf16, #tpu.memory_space<vmem>>, %arg3: memref<1x128xf32, #tpu.memory_space<vmem>>, %arg4: memref<1x128xf32, #tpu.memory_space<vmem>>, %arg5: memref<1x128xf32, #tpu.memory_space<vmem>>, %arg6: memref<32x128xbf16, #tpu.memory_space<vmem>>) attributes {dimension_semantics = [#tpu.dimension_semantics<parallel>], iteration_bounds = array<i64: 2>, scalar_prefetch = 0 : i64, scratch_operands = 0 : i64, tpu.core_type = #tpu.core_type<tc>, window_params = [{transform_indices = @transform_0, window_bounds = array<i64: 32, 48>}, {pipeline_mode = #tpu.pipeline_mode<synchronous>, transform_indices = @transform_1, window_bounds = array<i64: 48, 128>}, {pipeline_mode = #tpu.pipeline_mode<synchronous>, transform_indices = @transform_2, window_bounds = array<i64: 1, 128>}, {pipeline_mode = #tpu.pipeline_mode<synchronous>, transform_indices = @transform_3, window_bounds = array<i64: 1, 128>}, {pipeline_mode = #tpu.pipeline_mode<synchronous>, transform_indices = @transform_4, window_bounds = array<i64: 1, 128>}, {transform_indices = @transform_5, window_bounds = array<i64: 32, 128>}]} {
    %c0 = arith.constant 0 : index
    %c0_0 = arith.constant 0 : index
    %0 = vector.load %arg1[%c0, %c0_0] : memref<32x48xbf16, #tpu.memory_space<vmem>>, vector<32x48xbf16>
    %c0_1 = arith.constant 0 : index
    %c0_2 = arith.constant 0 : index
    %1 = vector.load %arg2[%c0_1, %c0_2] : memref<48x128xbf16, #tpu.memory_space<vmem>>, vector<48x128xbf16>
    %cst = arith.constant dense<0.000000e+00> : vector<32x128xf32>
    %2 = tpu.matmul %0, %1, %cst {dimension_numbers = #tpu.dot_dimension_numbers<[1], [0], [0], [1], [0, 0, 1, 1], [], []>} : vector<32x48xbf16>, vector<48x128xbf16>, vector<32x128xf32> -> vector<32x128xf32>
    %c0_3 = arith.constant 0 : index
    %c0_4 = arith.constant 0 : index
    %3 = vector.load %arg3[%c0_3, %c0_4] : memref<1x128xf32, #tpu.memory_space<vmem>>, vector<1x128xf32>
    %4 = vector.shape_cast %3 : vector<1x128xf32> to vector<128xf32>
    %5 = vector.shape_cast %4 : vector<128xf32> to vector<1x128xf32>
    %6 = vector.broadcast %5 : vector<1x128xf32> to vector<32x128xf32>
    %7 = arith.addf %2, %6 : vector<32x128xf32>
    %cst_5 = arith.constant dense<0.000000e+00> : vector<32xf32>
    %8 = vector.multi_reduction <add>, %7, %cst_5 [1] : vector<32x128xf32> to vector<32xf32>
    %9 = vector.shape_cast %8 : vector<32xf32> to vector<32x1xf32>
    %cst_6 = arith.constant 7.812500e-03 : f32
    %10 = vector.broadcast %cst_6 : f32 to vector<32x1xf32>
    %11 = arith.mulf %9, %10 : vector<32x1xf32>
    %12 = arith.mulf %7, %7 : vector<32x128xf32>
    %cst_7 = arith.constant dense<0.000000e+00> : vector<32xf32>
    %13 = vector.multi_reduction <add>, %12, %cst_7 [1] : vector<32x128xf32> to vector<32xf32>
    %14 = vector.shape_cast %13 : vector<32xf32> to vector<32x1xf32>
    %cst_8 = arith.constant 7.812500e-03 : f32
    %15 = vector.broadcast %cst_8 : f32 to vector<32x1xf32>
    %16 = arith.mulf %14, %15 : vector<32x1xf32>
    %17 = arith.mulf %11, %11 : vector<32x1xf32>
    %18 = arith.subf %16, %17 : vector<32x1xf32>
    %cst_9 = arith.constant 0.000000e+00 : f32
    %19 = vector.broadcast %cst_9 : f32 to vector<32x1xf32>
    %20 = arith.maximumf %18, %19 : vector<32x1xf32>
    %cst_10 = arith.constant 9.99999974E-6 : f32
    %21 = vector.broadcast %cst_10 : f32 to vector<32x1xf32>
    %22 = arith.addf %20, %21 : vector<32x1xf32>
    %23 = math.rsqrt %22 : vector<32x1xf32>
    %24 = vector.broadcast %11 : vector<32x1xf32> to vector<32x128xf32>
    %25 = arith.subf %7, %24 : vector<32x128xf32>
    %26 = vector.broadcast %23 : vector<32x1xf32> to vector<32x128xf32>
    %27 = arith.mulf %25, %26 : vector<32x128xf32>
    %c0_11 = arith.constant 0 : index
    %c0_12 = arith.constant 0 : index
    %28 = vector.load %arg4[%c0_11, %c0_12] : memref<1x128xf32, #tpu.memory_space<vmem>>, vector<1x128xf32>
    %29 = vector.shape_cast %28 : vector<1x128xf32> to vector<128xf32>
    %30 = vector.shape_cast %29 : vector<128xf32> to vector<1x128xf32>
    %31 = vector.broadcast %30 : vector<1x128xf32> to vector<32x128xf32>
    %32 = arith.mulf %27, %31 : vector<32x128xf32>
    %c0_13 = arith.constant 0 : index
    %c0_14 = arith.constant 0 : index
    %33 = vector.load %arg5[%c0_13, %c0_14] : memref<1x128xf32, #tpu.memory_space<vmem>>, vector<1x128xf32>
    %34 = vector.shape_cast %33 : vector<1x128xf32> to vector<128xf32>
    %35 = vector.shape_cast %34 : vector<128xf32> to vector<1x128xf32>
    %36 = vector.broadcast %35 : vector<1x128xf32> to vector<32x128xf32>
    %37 = arith.addf %32, %36 : vector<32x128xf32>
    %38 = arith.truncf %37 : vector<32x128xf32> to vector<32x128xbf16>
    %c0_15 = arith.constant 0 : index
    %c0_16 = arith.constant 0 : index
    %39 = vector.load %arg6[%c0_15, %c0_16] : memref<32x128xbf16, #tpu.memory_space<vmem>>, vector<32x128xbf16>
    tpu.vector_store %arg6[%c0_15, %c0_16], %38 {strides = array<i32>} : memref<32x128xbf16, #tpu.memory_space<vmem>>, vector<32x128xbf16>,
    return
  }
  func.func @transform_0(%arg0: i32) -> (i32, i32) {
    %c0_i32 = arith.constant 0 : i32
    %c0_i32_0 = arith.constant 0 : i32
    return %arg0, %c0_i32 : i32, i32
  }
  func.func @transform_1(%arg0: i32) -> (i32, i32) {
    %c0_i32 = arith.constant 0 : i32
    %c0_i32_0 = arith.constant 0 : i32
    %c0_i32_1 = arith.constant 0 : i32
    return %c0_i32, %c0_i32_0 : i32, i32
  }
  func.func @transform_2(%arg0: i32) -> (i32, i32) {
    %c0_i32 = arith.constant 0 : i32
    %c0_i32_0 = arith.constant 0 : i32
    %c0_i32_1 = arith.constant 0 : i32
    return %c0_i32, %c0_i32_0 : i32, i32
  }
  func.func @transform_3(%arg0: i32) -> (i32, i32) {
    %c0_i32 = arith.constant 0 : i32
    %c0_i32_0 = arith.constant 0 : i32
    %c0_i32_1 = arith.constant 0 : i32
    return %c0_i32, %c0_i32_0 : i32, i32
  }
  func.func @transform_4(%arg0: i32) -> (i32, i32) {
    %c0_i32 = arith.constant 0 : i32
    %c0_i32_0 = arith.constant 0 : i32
    %c0_i32_1 = arith.constant 0 : i32
    return %c0_i32, %c0_i32_0 : i32, i32
  }
  func.func @transform_5(%arg0: i32) -> (i32, i32) {
    %c0_i32 = arith.constant 0 : i32
    %c0_i32_0 = arith.constant 0 : i32
    return %arg0, %c0_i32 : i32, i32
  }
}

</mosaic_0001>

<llo_original>
// kernel: tpu_custom_call.1
$region0: #{tpu_custom_call.1}
  #allocation0 [shape = 'u32[]', space=smem, size = 0x4, offset = 0x4, fixed_abs, tag = 'smem constant byte address 0x4 - core index']
  #allocation1 [shape = 'u32[144,128]{1,0:T(1,128)}', space=vmem, size = 0x12000, scoped, tag = 'internal scratch']
  %s0 = inlined_call_operand.vmem [shape: bf16[64,48], index: 0, kind: input, shape index: {}]
  %s1 = inlined_call_operand.vmem [shape: bf16[48,128], index: 1, kind: input, shape index: {}]
  %s2 = inlined_call_operand.vmem [shape: f32[1,128], index: 2, kind: input, shape index: {}]
  %s3 = inlined_call_operand.vmem [shape: f32[1,128], index: 3, kind: input, shape index: {}]
  %s4 = inlined_call_operand.vmem [shape: f32[1,128], index: 4, kind: input, shape index: {}]
  %s5 = inlined_call_operand.hbm [shape: bf16[64,128], index: 5, kind: output, shape index: {}]
  %s6 = sld [smem:[#allocation0]]
  $region53: #{tpu_custom_call.1} parent=0
    _
  %s8 = ssub.s32 1, %s6
  %s9 = scalar_select 0, %s8, %s6
  $region1: #{tpu_custom_call.1} parent=0
    #allocation2 [shape = 'u8[16384]{0}', space=vmem, size = 0x4000, scoped, tag = 'output window, operand 0']
    #allocation3 [shape = 's32[2]{0}', space=sflag, size = 0x8, scoped, tag = 'scoped memory for tpu_custom_call.1']
    %10 = vsyncpa [#allocation3], 0
    %s11 = scalar_lea.sflag [#allocation3], 1
    %12 = vsyncpa %s11, 0
    loop: start=0, step=1, limit=4
    $region2: #{tpu_custom_call.1} parent=1 // loop_pre_header
      _
    $region3: #{tpu_custom_call.1} parent=1 // loop_header
      %s14 = sphi 0, %s18
      %p15 = scmp.ge.s32.totalorder %s14, 4
      %s24 = sphi 0, %s26
      %s27 = sphi 0, %s24
      %s28 = sphi 0, %s27
      %s44 = sphi 0, %s28
      %s48 = sphi 0, %s48
      %s50 = sphi 0, %s48
      %s51 = sphi 0, %s50
      %s65 = sphi 0, %s51
      %s69 = sphi 0, %s69
      %s71 = sphi 0, %s69
      %s72 = sphi 0, %s71
      %s86 = sphi 0, %s72
      %s90 = sphi 0, %s90
      %s92 = sphi 0, %s90
      %s93 = sphi 0, %s92
      %s107 = sphi 0, %s93
      %s111 = sphi 0, %s111
      %s113 = sphi 0, %s111
      %s114 = sphi 0, %s113
      %s128 = sphi 0, %s114
      %s134 = sphi 0, %s136
      %s137 = sphi 0, %s134
      %s138 = sphi 0, %s137
      %s154 = sphi 0, %s138
    $region4: #{tpu_custom_call.1} parent=1 // loop_header_branch
      %17 = sbr.rel (%p15) target = $region8
    $region5: #{tpu_custom_call.1} parent=1 // loop_body
      %s19 = ssub.s32 %s14, 1
      %s20 = ssub.s32 %s14, 2
      %s21 = sadd.s32 %s14, 1
      %s22 = ssub.s32 %s14, %s21
      %p23 = scmp.eq.s32.totalorder %s22, 0
      %s25 = sadd.s32 %s24, 1
      %s26 = scalar_select %p23, %s24, %s25
      %p29 = pneg %p23
      %p30 = scmp.eq.s32.totalorder %s14, 1
      %p31 = por %p29, %p30
      %p32 = scmp.ne.s32.totalorder %s24, %s27
      %p33 = scmp.eq.s32.totalorder %s14, 0
      %p34 = por %p32, %p33
      %p35 = scmp.ne.s32.totalorder %s24, %s27
      %p36 = scmp.eq.s32.totalorder %s19, 1
      %p37 = por %p35, %p36
      %p38 = scmp.ne.s32.totalorder %s27, %s28
      %p39 = scmp.eq.s32.totalorder %s19, 0
      %p40 = por %p38, %p39
      %p41 = scmp.ne.s32.totalorder %s27, %s28
      %p42 = scmp.eq.s32.totalorder %s20, 1
      %p43 = por %p41, %p42
      %p45 = scmp.ne.s32.totalorder %s28, %s44
      %p46 = scmp.eq.s32.totalorder %s20, 0
      %p47 = por %p45, %p46
      %s49 = sadd.s32 %s48, 1
      %p52 = scmp.eq.s32.totalorder %s14, 1
      %p53 = scmp.ne.s32.totalorder %s48, %s50
      %p54 = scmp.eq.s32.totalorder %s14, 0
      %p55 = por %p53, %p54
      %p56 = scmp.ne.s32.totalorder %s48, %s50
      %p57 = scmp.eq.s32.totalorder %s19, 1
      %p58 = por %p56, %p57
      %p59 = scmp.ne.s32.totalorder %s50, %s51
      %p60 = scmp.eq.s32.totalorder %s19, 0
      %p61 = por %p59, %p60
      %p62 = scmp.ne.s32.totalorder %s50, %s51
      %p63 = scmp.eq.s32.totalorder %s20, 1
      %p64 = por %p62, %p63
      %p66 = scmp.ne.s32.totalorder %s51, %s65
      %p67 = scmp.eq.s32.totalorder %s20, 0
      %p68 = por %p66, %p67
      %s70 = sadd.s32 %s69, 1
      %p73 = scmp.eq.s32.totalorder %s14, 1
      %p74 = scmp.ne.s32.totalorder %s69, %s71
      %p75 = scmp.eq.s32.totalorder %s14, 0
      %p76 = por %p74, %p75
      %p77 = scmp.ne.s32.totalorder %s69, %s71
      %p78 = scmp.eq.s32.totalorder %s19, 1
      %p79 = por %p77, %p78
      %p80 = scmp.ne.s32.totalorder %s71, %s72
      %p81 = scmp.eq.s32.totalorder %s19, 0
      %p82 = por %p80, %p81
      %p83 = scmp.ne.s32.totalorder %s71, %s72
      %p84 = scmp.eq.s32.totalorder %s20, 1
      %p85 = por %p83, %p84
      %p87 = scmp.ne.s32.totalorder %s72, %s86
      %p88 = scmp.eq.s32.totalorder %s20, 0
      %p89 = por %p87, %p88
      %s91 = sadd.s32 %s90, 1
      %p94 = scmp.eq.s32.totalorder %s14, 1
      %p95 = scmp.ne.s32.totalorder %s90, %s92
      %p96 = scmp.eq.s32.totalorder %s14, 0
      %p97 = por %p95, %p96
      %p98 = scmp.ne.s32.totalorder %s90, %s92
      %p99 = scmp.eq.s32.totalorder %s19, 1
      %p100 = por %p98, %p99
      %p101 = scmp.ne.s32.totalorder %s92, %s93
      %p102 = scmp.eq.s32.totalorder %s19, 0
      %p103 = por %p101, %p102
      %p104 = scmp.ne.s32.totalorder %s92, %s93
      %p105 = scmp.eq.s32.totalorder %s20, 1
      %p106 = por %p104, %p105
      %p108 = scmp.ne.s32.totalorder %s93, %s107
      %p109 = scmp.eq.s32.totalorder %s20, 0
      %p110 = por %p108, %p109
      %s112 = sadd.s32 %s111, 1
      %p115 = scmp.eq.s32.totalorder %s14, 1
      %p116 = scmp.ne.s32.totalorder %s111, %s113
      %p117 = scmp.eq.s32.totalorder %s14, 0
      %p118 = por %p116, %p117
      %p119 = scmp.ne.s32.totalorder %s111, %s113
      %p120 = scmp.eq.s32.totalorder %s19, 1
      %p121 = por %p119, %p120
      %p122 = scmp.ne.s32.totalorder %s113, %s114
      %p123 = scmp.eq.s32.totalorder %s19, 0
      %p124 = por %p122, %p123
      %p125 = scmp.ne.s32.totalorder %s113, %s114
      %p126 = scmp.eq.s32.totalorder %s20, 1
      %p127 = por %p125, %p126
      %p129 = scmp.ne.s32.totalorder %s114, %s128
      %p130 = scmp.eq.s32.totalorder %s20, 0
      %p131 = por %p129, %p130
      %s132 = ssub.s32 %s14, %s21
      %p133 = scmp.eq.s32.totalorder %s132, 0
      %s135 = sadd.s32 %s134, 1
      %s136 = scalar_select %p133, %s134, %s135
      %p139 = pneg %p133
      %p140 = scmp.eq.s32.totalorder %s14, 1
      %p141 = por %p139, %p140
      %p142 = scmp.ne.s32.totalorder %s134, %s137
      %p143 = scmp.eq.s32.totalorder %s14, 0
      %p144 = por %p142, %p143
      %p145 = scmp.ne.s32.totalorder %s134, %s137
      %p146 = scmp.eq.s32.totalorder %s19, 1
      %p147 = por %p145, %p146
      %p148 = scmp.ne.s32.totalorder %s137, %s138
      %p149 = scmp.eq.s32.totalorder %s19, 0
      %p150 = por %p148, %p149
      %p151 = scmp.ne.s32.totalorder %s137, %s138
      %p152 = scmp.eq.s32.totalorder %s20, 1
      %p153 = por %p151, %p152
      %p155 = scmp.ne.s32.totalorder %s138, %s154
      %p156 = scmp.eq.s32.totalorder %s20, 0
      %p157 = por %p155, %p156
      %p158 = scmp.le.s32.totalorder 1, %s14
      %p159 = scmp.lt.s32.totalorder %s14, 3
      %p160 = pnand %p158, %p159
      %p161 = pneg %p160
      // Predicated region
      $region9: #{tpu_custom_call.1} parent=5 // pred_check
        _
      $region10: #{tpu_custom_call.1} parent=5 // pred_check_branch
        %163 = sbr.rel (%p160) target = $region12
      $region11: #{tpu_custom_call.1} parent=5 // pred_region
        %s164 = ssub.s32 %s14, 1
        // Predicated region
        $region13: #{tpu_custom_call.1} parent=11 // pred_check
          %p165 = pneg %p61
        $region14: #{tpu_custom_call.1} parent=11 // pred_check_branch
          %167 = sbr.rel (%p165) target = $region16
        $region15: #{tpu_custom_call.1} parent=11 // pred_region
          _
        $region16: #{tpu_custom_call.1} parent=11 // pred_fallthru
          _
        // Predicated region
        $region17: #{tpu_custom_call.1} parent=11 // pred_check
          %p168 = pneg %p82
        $region18: #{tpu_custom_call.1} parent=11 // pred_check_branch
          %170 = sbr.rel (%p168) target = $region20
        $region19: #{tpu_custom_call.1} parent=11 // pred_region
          _
        $region20: #{tpu_custom_call.1} parent=11 // pred_fallthru
          _
        // Predicated region
        $region21: #{tpu_custom_call.1} parent=11 // pred_check
          %p171 = pneg %p103
        $region22: #{tpu_custom_call.1} parent=11 // pred_check_branch
          %173 = sbr.rel (%p171) target = $region24
        $region23: #{tpu_custom_call.1} parent=11 // pred_region
          _
        $region24: #{tpu_custom_call.1} parent=11 // pred_fallthru
          _
        // Predicated region
        $region25: #{tpu_custom_call.1} parent=11 // pred_check
          %p174 = pneg %p124
        $region26: #{tpu_custom_call.1} parent=11 // pred_check_branch
          %176 = sbr.rel (%p174) target = $region28
        $region27: #{tpu_custom_call.1} parent=11 // pred_region
          _
        $region28: #{tpu_custom_call.1} parent=11 // pred_fallthru
          _
      $region12: #{tpu_custom_call.1} parent=5 // pred_fallthru
        _
      %p177 = scmp.lt.s32.totalorder %s14, 2
      // Predicated region
      $region29: #{tpu_custom_call.1} parent=5 // pred_check
        %p178 = pneg %p177
      $region30: #{tpu_custom_call.1} parent=5 // pred_check_branch
        %180 = sbr.rel (%p178) target = $region32
      $region31: #{tpu_custom_call.1} parent=5 // pred_region
        // Predicated region
        $region33: #{tpu_custom_call.1} parent=31 // pred_check
          %p181 = pneg %p34
        $region34: #{tpu_custom_call.1} parent=31 // pred_check_branch
          %183 = sbr.rel (%p181) target = $region36
        $region35: #{tpu_custom_call.1} parent=31 // pred_region
          %s184 = smul.u32 4, %s14
          %p185 = scmp.lt.s32.totalorder %s184, 7
          %s186 = scalar_select %p185, %s184, 7
          %s187 = smul.addr %s186, 4
          %s188 = scalar_lea.vmem %s0, %s187
          %s189 = smul.u32 4, %s14
        $region36: #{tpu_custom_call.1} parent=31 // pred_fallthru
          _
      $region32: #{tpu_custom_call.1} parent=5 // pred_fallthru
        _
      %p190 = scmp.le.s32.totalorder 1, %s14
      %p191 = scmp.lt.s32.totalorder %s14, 3
      %p192 = pnand %p190, %p191
      %p193 = pneg %p192
      // Predicated region
      $region37: #{tpu_custom_call.1} parent=5 // pred_check
        _
      $region38: #{tpu_custom_call.1} parent=5 // pred_check_branch
        %195 = sbr.rel (%p192) target = $region40
      $region39: #{tpu_custom_call.1} parent=5 // pred_region
        %s196 = ssub.s32 %s14, 1
        %s197 = smul.u32 4, %s19
        %p198 = scmp.lt.s32.totalorder %s197, 7
        %s199 = scalar_select %p198, %s197, 7
        %s200 = smul.addr %s199, 4
        %s201 = scalar_lea.vmem %s0, %s200
        %p202 = pneg %p40
        %p203 = pneg %p37
        %p204 = pneg %p61
        %p205 = pneg %p58
        %p206 = pneg %p82
        %p207 = pneg %p79
        %p208 = pneg %p103
        %p209 = pneg %p100
        %p210 = pneg %p124
        %p211 = pneg %p121
        %p212 = pneg %p150
        %p213 = pneg %p147
        %s214 = sand.u32 %s137, 1
        %s215 = scalar_lea.sflag [#allocation3], %s214
        %s216 = sand.u32 %s137, 1
        %s217 = smul.addr %s216, 16
        %s218 = scalar_lea.vmem [#allocation2], %s217
        %s219 = smul.u32 4, %s19
        %p220 = scmp.lt.s32.totalorder %s219, 7
        %s221 = scalar_select %p220, %s219, 7
        %s222 = smul.addr %s221, 4
        %s223 = scalar_lea.vmem %s0, %s222
        %s224 = smul.u32 4, %s19
        %s225 = smul.u32 4, %s19
        %v227 = vld [vmem:[%s223] sm:$0xf]
        %v228 = vld [vmem:[%s223 + $0x4] sm:$0xf]
        %v229 = vld [vmem:[%s223 + $0x8] sm:$0xf]
        %v230 = vld [vmem:[%s223 + $0xc] sm:$0xf]
        %v231 = vld [vmem:[%s1] sm:$0xf]
        %v232 = vld [vmem:[%s1 + $0x4] sm:$0xf]
        %v233 = vld [vmem:[%s1 + $0x8] sm:$0xf]
        %v234 = vld [vmem:[%s1 + $0xc] sm:$0xf]
        %v235 = vld [vmem:[%s1 + $0x10] sm:$0xf]
        %v236 = vld [vmem:[%s1 + $0x14] sm:$0xf]
        %v237 = vld [vmem:[%s2] sm:$0x1]
        %v239 = vlaneseq
        %v240 = vshrl.u32 %v239, 7
        %v241 = vsub.s32 0, %v240
        %v242 = vrot.slane %v237, %v241
        %v248 = vunpack.c.l.b16 %v227
        %v249 = vunpack.c.l.b16 %v228
        %v250 = vunpack.c.l.b16 %v229
        %v251 = vunpack.c.l.b16 %v230
        %v252 = vpack.c.b16 %v249, %v248
        %v253 = vpack.c.b16 %v251, %v250
        %v260 = vunpack.c.l.b16 %v231
        %v261 = vunpack.c.l.b16 %v232
        %v262 = vunpack.c.l.b16 %v233
        %v263 = vunpack.c.l.b16 %v234
        %v264 = vunpack.c.l.b16 %v235
        %v265 = vunpack.c.l.b16 %v236
        %v266 = vpack.c.b16 %v261, %v260
        %v267 = vpack.c.b16 %v263, %v262
        %v268 = vpack.c.b16 %v265, %v264
        %vm272 = vcmask 392192
        %v274 = vsel %vm272, %v252, 0
        %v277 = vsel %vm272, %v253, 0
        %279 = vmatprep.subr.bf16.mxu0 0
        %280 = vmatpush1.bf16.msra.mxu0 %v266
        %281 = vmatprep.subr.bf16.mxu0 0
        %282 = vmatpush1.bf16.msra.mxu0 %v267
        %283 = vmatprep.subr.bf16.mxu0 0
        %284 = vmatpush1.bf16.msra.mxu0 %v268
        %285 = vmatprep.subr.bf16.mxu0 0
        %286 = vmatpush1.bf16.msra.mxu0 0
        %287 = vmatprep.subr.bf16.mxu0 0
        %288 = vmatpush1.bf16.msra.mxu0 0
        %289 = vmatprep.subr.bf16.mxu0 0
        %290 = vmatpush1.bf16.msra.mxu0 0
        %291 = vmatprep.subr.bf16.mxu0 0
        %292 = vmatpush1.bf16.msra.mxu0 0
        %293 = vmatprep.subr.bf16.mxu0 0
        %294 = vmatpush1.bf16.msra.mxu0 0
        %295 = vmatprep.subr.bf16.mxu0 0
        %296 = vmatpush1.bf16.msra.mxu0 0
        %297 = vmatprep.subr.bf16.mxu0 0
        %298 = vmatpush1.bf16.msra.mxu0 0
        %299 = vmatprep.subr.bf16.mxu0 0
        %300 = vmatpush1.bf16.msra.mxu0 0
        %301 = vmatprep.subr.bf16.mxu0 0
        %302 = vmatpush1.bf16.msra.mxu0 0
        %303 = vmatprep.subr.bf16.mxu0 0
        %304 = vmatpush1.bf16.msra.mxu0 0
        %305 = vmatprep.subr.bf16.mxu0 0
        %306 = vmatpush1.bf16.msra.mxu0 0
        %307 = vmatprep.subr.bf16.mxu0 0
        %308 = vmatpush1.bf16.msra.mxu0 0
        %309 = vmatprep.subr.bf16.mxu0 0
        %310 = vmatpush1.bf16.msra.mxu0 0
        %311 = vmatprep.mubr.bf16.mxu0 0
        %312 = vmatmul.mubr.bf16.gmra.mrb[0].mxu0 %v274
        %v313 = vpop.f32.mrb[0].mxu0
        %v314 = vadd.f32 %v242, %v313
        %v315 = vpop.f32.mrb[0].mxu0
        %v316 = vpop.f32.mrb[0].mxu0
        %v317 = vadd.f32 %v242, %v316
        %v318 = vpop.f32.mrb[0].mxu0
        %319 = vmatprep.mubr.bf16.mxu0 0
        %320 = vmatmul.mubr.bf16.gmra.mrb[0].mxu0 %v277
        %v321 = vpop.f32.mrb[0].mxu0
        %v322 = vadd.f32 %v242, %v321
        %v323 = vpop.f32.mrb[0].mxu0
        %v324 = vpop.f32.mrb[0].mxu0
        %v325 = vadd.f32 %v242, %v324
        %v326 = vpop.f32.mrb[0].mxu0
        %327 = vdwg.mxu0
        %328 = vadd.xlane.f32.xlu0 %v314
        %v329 = vpop.xlane.xlu0 %328
        %330 = vadd.xlane.f32.xlu0 %v317
        %v331 = vpop.xlane.xlu0 %330
        %332 = vadd.xlane.f32.xlu0 %v322
        %v333 = vpop.xlane.xlu0 %332
        %334 = vadd.xlane.f32.xlu0 %v325
        %v335 = vpop.xlane.xlu0 %334
        %v336 = vmul.f32 %v329, 0.0078125
        %v337 = vmul.f32 %v331, 0.0078125
        %v338 = vmul.f32 %v333, 0.0078125
        %v339 = vmul.f32 %v335, 0.0078125
        %v340 = vmul.f32 %v314, %v314
        %v341 = vmul.f32 %v317, %v317
        %v342 = vmul.f32 %v322, %v322
        %v343 = vmul.f32 %v325, %v325
        %344 = vadd.xlane.f32.xlu0 %v340
        %v345 = vpop.xlane.xlu0 %344
        %346 = vadd.xlane.f32.xlu0 %v341
        %v347 = vpop.xlane.xlu0 %346
        %348 = vadd.xlane.f32.xlu0 %v342
        %v349 = vpop.xlane.xlu0 %348
        %350 = vadd.xlane.f32.xlu0 %v343
        %v351 = vpop.xlane.xlu0 %350
        %v352 = vmul.f32 %v345, 0.0078125
        %v353 = vmul.f32 %v347, 0.0078125
        %v354 = vmul.f32 %v349, 0.0078125
        %v355 = vmul.f32 %v351, 0.0078125
        %v356 = vmul.f32 %v336, %v336
        %v357 = vmul.f32 %v337, %v337
        %v358 = vmul.f32 %v338, %v338
        %v359 = vmul.f32 %v339, %v339
        %v360 = vsub.f32 %v352, %v356
        %v361 = vsub.f32 %v353, %v357
        %v362 = vsub.f32 %v354, %v358
        %v363 = vsub.f32 %v355, %v359
        %v364 = vmax.f32 %v360, 0.0
        %v365 = vmax.f32 %v361, 0.0
        %v366 = vmax.f32 %v362, 0.0
        %v367 = vmax.f32 %v363, 0.0
        %v368 = vadd.f32 %v364, 1e-05
        %v369 = vadd.f32 %v365, 1e-05
        %v370 = vadd.f32 %v366, 1e-05
        %v371 = vadd.f32 %v367, 1e-05
        %v372 = vrsqrt.pop %v368
        %v373 = vrsqrt.pop %v369
        %v374 = vrsqrt.pop %v370
        %v375 = vrsqrt.pop %v371
        %v376 = vsub.f32 %v314, %v336
        %v377 = vsub.f32 %v317, %v337
        %v378 = vsub.f32 %v322, %v338
        %v379 = vsub.f32 %v325, %v339
        %v380 = vmul.f32 %v376, %v372
        %v381 = vmul.f32 %v377, %v373
        %v382 = vmul.f32 %v378, %v374
        %v383 = vmul.f32 %v379, %v375
        %v384 = vld [vmem:[%s3] sm:$0x1]
        %v386 = vlaneseq
        %v387 = vshrl.u32 %v386, 7
        %v388 = vsub.s32 0, %v387
        %v389 = vrot.slane %v384, %v388
        %v391 = vmul.f32 %v380, %v389
        %v392 = vmul.f32 %v381, %v389
        %v393 = vmul.f32 %v382, %v389
        %v394 = vmul.f32 %v383, %v389
        %v395 = vld [vmem:[%s4] sm:$0x1]
        %v397 = vlaneseq
        %v398 = vshrl.u32 %v397, 7
        %v399 = vsub.s32 0, %v398
        %v400 = vrot.slane %v395, %v399
        %v402 = vadd.f32 %v391, %v400
        %v403 = vadd.f32 %v392, %v400
        %v404 = vadd.f32 %v393, %v400
        %v405 = vadd.f32 %v394, %v400
        %v406 = vpack.c.bf16 %v403, %v402
        %v407 = vpack.c.bf16 %v405, %v404
        %v410 = vunpack.c.l.b16 %v406
        %v411 = vunpack.c.h.b16 %v406
        %v412 = vunpack.c.l.b16 %v407
        %v413 = vunpack.c.h.b16 %v407
        %v414 = vpack.c.b16 %v410, %v410
        %v415 = vpack.c.b16 %v411, %v411
        %v416 = vpack.c.b16 %v412, %v412
        %v417 = vpack.c.b16 %v413, %v413
        %422 = vst [vmem:[%s218] sm:$0xf] %v414
        %423 = vst [vmem:[%s218 + $0x4] sm:$0xf] %v415
        %424 = vst [vmem:[%s218 + $0x8] sm:$0xf] %v416
        %425 = vst [vmem:[%s218 + $0xc] sm:$0xf] %v417
        %s426 = sand.u32 %s137, 1
        %s427 = scalar_lea.sflag [#allocation3], %s426
        %s428 = sand.u32 %s137, 1
        %s429 = smul.addr %s428, 16
        %s430 = scalar_lea.vmem [#allocation2], %s429
        // Predicated region
        $region41: #{tpu_custom_call.1} parent=39 // pred_check
          %p431 = pneg %p147
        $region42: #{tpu_custom_call.1} parent=39 // pred_check_branch
          %433 = sbr.rel (%p431) target = $region44
        $region43: #{tpu_custom_call.1} parent=39 // pred_region
          %s434 = smul.u32 4, %s19
          %s436 = ssub.s32 256, 256
          %437 = vsyncadd %s427, %s436
          %s438 = smul.addr %s434, 64
          %s439 = scalar_lea.hbm %s5, %s438
          %s440 = sshll.u32 %s430, 4
          %s441 = int_to_ptr.vmem [resolvable:$true] %s440
          %446 = dma.vmem_to_hbm [thread:$0]  %s441, 256, %s439, %s427, 64, 64, 4
        $region44: #{tpu_custom_call.1} parent=39 // pred_fallthru
          _
      $region40: #{tpu_custom_call.1} parent=5 // pred_fallthru
        _
      %p447 = scmp.le.s32.totalorder 2, %s14
      // Predicated region
      $region45: #{tpu_custom_call.1} parent=5 // pred_check
        %p448 = pneg %p447
      $region46: #{tpu_custom_call.1} parent=5 // pred_check_branch
        %450 = sbr.rel (%p448) target = $region48
      $region47: #{tpu_custom_call.1} parent=5 // pred_region
        %s451 = ssub.s32 %s14, 2
        // Predicated region
        $region49: #{tpu_custom_call.1} parent=47 // pred_check
          %p452 = pneg %p153
        $region50: #{tpu_custom_call.1} parent=47 // pred_check_branch
          %454 = sbr.rel (%p452) target = $region52
        $region51: #{tpu_custom_call.1} parent=47 // pred_region
          %s455 = sand.u32 %s138, 1
          %s456 = scalar_lea.sflag [#allocation3], %s455
          %s457 = sand.u32 %s138, 1
          %s458 = smul.addr %s457, 16
          %s459 = scalar_lea.vmem [#allocation2], %s458
          %460 = dma.done %s456, 256
        $region52: #{tpu_custom_call.1} parent=47 // pred_fallthru
          _
      $region48: #{tpu_custom_call.1} parent=5 // pred_fallthru
        _
    $region6: #{tpu_custom_call.1} parent=1 // loop_footer
      %s18 = sadd.s32 1, %s14
    $region7: #{tpu_custom_call.1} parent=1 // loop_footer_branch
      %13 = sbr.rel target = $region3
    $region8: #{tpu_custom_call.1} parent=1 // loop_exit
      _
    %461 = vsyncpa [#allocation3], 1
    %s462 = scalar_lea.sflag [#allocation3], 1
    %463 = vsyncpa %s462, 1

// kernel: tpu_custom_call.1
$region0: #{tpu_custom_call.1}
  #allocation0 [shape = 'u32[]', space=smem, size = 0x4, offset = 0x4, fixed_abs, tag = 'smem constant byte address 0x4 - core index']
  #allocation1 [shape = 'u32[144,128]{1,0:T(1,128)}', space=vmem, size = 0x12000, scoped, tag = 'internal scratch']
  %s0 = inlined_call_operand.vmem [shape: bf16[64,48], index: 0, kind: input, shape index: {}]
  %s1 = inlined_call_operand.vmem [shape: bf16[48,128], index: 1, kind: input, shape index: {}]
  %s2 = inlined_call_operand.vmem [shape: f32[1,128], index: 2, kind: input, shape index: {}]
  %s3 = inlined_call_operand.vmem [shape: f32[1,128], index: 3, kind: input, shape index: {}]
  %s4 = inlined_call_operand.vmem [shape: f32[1,128], index: 4, kind: input, shape index: {}]
  %s5 = inlined_call_operand.hbm [shape: bf16[64,128], index: 5, kind: output, shape index: {}]
  %s6 = sld [smem:[#allocation0]]
  $region53: #{tpu_custom_call.1} parent=0
    _
  %s8 = ssub.s32 1, %s6
  %s9 = scalar_select 0, %s8, %s6
  $region1: #{tpu_custom_call.1} parent=0
    #allocation2 [shape = 'u8[16384]{0}', space=vmem, size = 0x4000, scoped, tag = 'output window, operand 0']
    #allocation3 [shape = 's32[2]{0}', space=sflag, size = 0x8, scoped, tag = 'scoped memory for tpu_custom_call.1']
    %10 = vsyncpa [#allocation3], 0
    %s11 = scalar_lea.sflag [#allocation3], 1
    %12 = vsyncpa %s11, 0
    loop: start=0, step=1, limit=4
    $region2: #{tpu_custom_call.1} parent=1 // loop_pre_header
      _
    $region3: #{tpu_custom_call.1} parent=1 // loop_header
      %s14 = sphi 0, %s18
      %p15 = scmp.ge.s32.totalorder %s14, 4
      %s24 = sphi 0, %s26
      %s27 = sphi 0, %s24
      %s28 = sphi 0, %s27
      %s44 = sphi 0, %s28
      %s48 = sphi 0, %s48
      %s50 = sphi 0, %s48
      %s51 = sphi 0, %s50
      %s65 = sphi 0, %s51
      %s69 = sphi 0, %s69
      %s71 = sphi 0, %s69
      %s72 = sphi 0, %s71
      %s86 = sphi 0, %s72
      %s90 = sphi 0, %s90
      %s92 = sphi 0, %s90
      %s93 = sphi 0, %s92
      %s107 = sphi 0, %s93
      %s111 = sphi 0, %s111
      %s113 = sphi 0, %s111
      %s114 = sphi 0, %s113
      %s128 = sphi 0, %s114
      %s134 = sphi 0, %s136
      %s137 = sphi 0, %s134
      %s138 = sphi 0, %s137
      %s154 = sphi 0, %s138
    $region4: #{tpu_custom_call.1} parent=1 // loop_header_branch
      %17 = sbr.rel (%p15) target = $region8
    $region5: #{tpu_custom_call.1} parent=1 // loop_body
      %s19 = ssub.s32 %s14, 1
      %s20 = ssub.s32 %s14, 2
      %s21 = sadd.s32 %s14, 1
      %s22 = ssub.s32 %s14, %s21
      %p23 = scmp.eq.s32.totalorder %s22, 0
      %s25 = sadd.s32 %s24, 1
      %s26 = scalar_select %p23, %s24, %s25
      %p29 = pneg %p23
      %p30 = scmp.eq.s32.totalorder %s14, 1
      %p31 = por %p29, %p30
      %p32 = scmp.ne.s32.totalorder %s24, %s27
      %p33 = scmp.eq.s32.totalorder %s14, 0
      %p34 = por %p32, %p33
      %p35 = scmp.ne.s32.totalorder %s24, %s27
      %p36 = scmp.eq.s32.totalorder %s19, 1
      %p37 = por %p35, %p36
      %p38 = scmp.ne.s32.totalorder %s27, %s28
      %p39 = scmp.eq.s32.totalorder %s19, 0
      %p40 = por %p38, %p39
      %p41 = scmp.ne.s32.totalorder %s27, %s28
      %p42 = scmp.eq.s32.totalorder %s20, 1
      %p43 = por %p41, %p42
      %p45 = scmp.ne.s32.totalorder %s28, %s44
      %p46 = scmp.eq.s32.totalorder %s20, 0
      %p47 = por %p45, %p46
      %s49 = sadd.s32 %s48, 1
      %p52 = scmp.eq.s32.totalorder %s14, 1
      %p53 = scmp.ne.s32.totalorder %s48, %s50
      %p54 = scmp.eq.s32.totalorder %s14, 0
      %p55 = por %p53, %p54
      %p56 = scmp.ne.s32.totalorder %s48, %s50
      %p57 = scmp.eq.s32.totalorder %s19, 1
      %p58 = por %p56, %p57
      %p59 = scmp.ne.s32.totalorder %s50, %s51
      %p60 = scmp.eq.s32.totalorder %s19, 0
      %p61 = por %p59, %p60
      %p62 = scmp.ne.s32.totalorder %s50, %s51
      %p63 = scmp.eq.s32.totalorder %s20, 1
      %p64 = por %p62, %p63
      %p66 = scmp.ne.s32.totalorder %s51, %s65
      %p67 = scmp.eq.s32.totalorder %s20, 0
      %p68 = por %p66, %p67
      %s70 = sadd.s32 %s69, 1
      %p73 = scmp.eq.s32.totalorder %s14, 1
      %p74 = scmp.ne.s32.totalorder %s69, %s71
      %p75 = scmp.eq.s32.totalorder %s14, 0
      %p76 = por %p74, %p75
      %p77 = scmp.ne.s32.totalorder %s69, %s71
      %p78 = scmp.eq.s32.totalorder %s19, 1
      %p79 = por %p77, %p78
      %p80 = scmp.ne.s32.totalorder %s71, %s72
      %p81 = scmp.eq.s32.totalorder %s19, 0
      %p82 = por %p80, %p81
      %p83 = scmp.ne.s32.totalorder %s71, %s72
      %p84 = scmp.eq.s32.totalorder %s20, 1
      %p85 = por %p83, %p84
      %p87 = scmp.ne.s32.totalorder %s72, %s86
      %p88 = scmp.eq.s32.totalorder %s20, 0
      %p89 = por %p87, %p88
      %s91 = sadd.s32 %s90, 1
      %p94 = scmp.eq.s32.totalorder %s14, 1
      %p95 = scmp.ne.s32.totalorder %s90, %s92
      %p96 = scmp.eq.s32.totalorder %s14, 0
      %p97 = por %p95, %p96
      %p98 = scmp.ne.s32.totalorder %s90, %s92
      %p99 = scmp.eq.s32.totalorder %s19, 1
      %p100 = por %p98, %p99
      %p101 = scmp.ne.s32.totalorder %s92, %s93
      %p102 = scmp.eq.s32.totalorder %s19, 0
      %p103 = por %p101, %p102
      %p104 = scmp.ne.s32.totalorder %s92, %s93
      %p105 = scmp.eq.s32.totalorder %s20, 1
      %p106 = por %p104, %p105
      %p108 = scmp.ne.s32.totalorder %s93, %s107
      %p109 = scmp.eq.s32.totalorder %s20, 0
      %p110 = por %p108, %p109
      %s112 = sadd.s32 %s111, 1
      %p115 = scmp.eq.s32.totalorder %s14, 1
      %p116 = scmp.ne.s32.totalorder %s111, %s113
      %p117 = scmp.eq.s32.totalorder %s14, 0
      %p118 = por %p116, %p117
      %p119 = scmp.ne.s32.totalorder %s111, %s113
      %p120 = scmp.eq.s32.totalorder %s19, 1
      %p121 = por %p119, %p120
      %p122 = scmp.ne.s32.totalorder %s113, %s114
      %p123 = scmp.eq.s32.totalorder %s19, 0
      %p124 = por %p122, %p123
      %p125 = scmp.ne.s32.totalorder %s113, %s114
      %p126 = scmp.eq.s32.totalorder %s20, 1
      %p127 = por %p125, %p126
      %p129 = scmp.ne.s32.totalorder %s114, %s128
      %p130 = scmp.eq.s32.totalorder %s20, 0
      %p131 = por %p129, %p130
      %s132 = ssub.s32 %s14, %s21
      %p133 = scmp.eq.s32.totalorder %s132, 0
      %s135 = sadd.s32 %s134, 1
      %s136 = scalar_select %p133, %s134, %s135
      %p139 = pneg %p133
      %p140 = scmp.eq.s32.totalorder %s14, 1
      %p141 = por %p139, %p140
      %p142 = scmp.ne.s32.totalorder %s134, %s137
      %p143 = scmp.eq.s32.totalorder %s14, 0
      %p144 = por %p142, %p143
      %p145 = scmp.ne.s32.totalorder %s134, %s137
      %p146 = scmp.eq.s32.totalorder %s19, 1
      %p147 = por %p145, %p146
      %p148 = scmp.ne.s32.totalorder %s137, %s138
      %p149 = scmp.eq.s32.totalorder %s19, 0
      %p150 = por %p148, %p149
      %p151 = scmp.ne.s32.totalorder %s137, %s138
      %p152 = scmp.eq.s32.totalorder %s20, 1
      %p153 = por %p151, %p152
      %p155 = scmp.ne.s32.totalorder %s138, %s154
      %p156 = scmp.eq.s32.totalorder %s20, 0
      %p157 = por %p155, %p156
      %p158 = scmp.le.s32.totalorder 1, %s14
      %p159 = scmp.lt.s32.totalorder %s14, 3
      %p160 = pnand %p158, %p159
      %p161 = pneg %p160
      // Predicated region
      $region9: #{tpu_custom_call.1} parent=5 // pred_check
        _
      $region10: #{tpu_custom_call.1} parent=5 // pred_check_branch
        %163 = sbr.rel (%p160) target = $region12
      $region11: #{tpu_custom_call.1} parent=5 // pred_region
        %s164 = ssub.s32 %s14, 1
        // Predicated region
        $region13: #{tpu_custom_call.1} parent=11 // pred_check
          %p165 = pneg %p61
        $region14: #{tpu_custom_call.1} parent=11 // pred_check_branch
          %167 = sbr.rel (%p165) target = $region16
        $region15: #{tpu_custom_call.1} parent=11 // pred_region
          _
        $region16: #{tpu_custom_call.1} parent=11 // pred_fallthru
          _
        // Predicated region
        $region17: #{tpu_custom_call.1} parent=11 // pred_check
          %p168 = pneg %p82
        $region18: #{tpu_custom_call.1} parent=11 // pred_check_branch
          %170 = sbr.rel (%p168) target = $region20
        $region19: #{tpu_custom_call.1} parent=11 // pred_region
          _
        $region20: #{tpu_custom_call.1} parent=11 // pred_fallthru
          _
        // Predicated region
        $region21: #{tpu_custom_call.1} parent=11 // pred_check
          %p171 = pneg %p103
        $region22: #{tpu_custom_call.1} parent=11 // pred_check_branch
          %173 = sbr.rel (%p171) target = $region24
        $region23: #{tpu_custom_call.1} parent=11 // pred_region
          _
        $region24: #{tpu_custom_call.1} parent=11 // pred_fallthru
          _
        // Predicated region
        $region25: #{tpu_custom_call.1} parent=11 // pred_check
          %p174 = pneg %p124
        $region26: #{tpu_custom_call.1} parent=11 // pred_check_branch
          %176 = sbr.rel (%p174) target = $region28
        $region27: #{tpu_custom_call.1} parent=11 // pred_region
          _
        $region28: #{tpu_custom_call.1} parent=11 // pred_fallthru
          _
      $region12: #{tpu_custom_call.1} parent=5 // pred_fallthru
        _
      %p177 = scmp.lt.s32.totalorder %s14, 2
      // Predicated region
      $region29: #{tpu_custom_call.1} parent=5 // pred_check
        %p178 = pneg %p177
      $region30: #{tpu_custom_call.1} parent=5 // pred_check_branch
        %180 = sbr.rel (%p178) target = $region32
      $region31: #{tpu_custom_call.1} parent=5 // pred_region
        // Predicated region
        $region33: #{tpu_custom_call.1} parent=31 // pred_check
          %p181 = pneg %p34
        $region34: #{tpu_custom_call.1} parent=31 // pred_check_branch
          %183 = sbr.rel (%p181) target = $region36
        $region35: #{tpu_custom_call.1} parent=31 // pred_region
          %s184 = smul.u32 4, %s14
          %p185 = scmp.lt.s32.totalorder %s184, 7
          %s186 = scalar_select %p185, %s184, 7
          %s187 = smul.addr %s186, 4
          %s188 = scalar_lea.vmem %s0, %s187
          %s189 = smul.u32 4, %s14
        $region36: #{tpu_custom_call.1} parent=31 // pred_fallthru
          _
      $region32: #{tpu_custom_call.1} parent=5 // pred_fallthru
        _
      %p190 = scmp.le.s32.totalorder 1, %s14
      %p191 = scmp.lt.s32.totalorder %s14, 3
      %p192 = pnand %p190, %p191
      %p193 = pneg %p192
      // Predicated region
      $region37: #{tpu_custom_call.1} parent=5 // pred_check
        _
      $region38: #{tpu_custom_call.1} parent=5 // pred_check_branch
        %195 = sbr.rel (%p192) target = $region40
      $region39: #{tpu_custom_call.1} parent=5 // pred_region
        %s196 = ssub.s32 %s14, 1
        %s197 = smul.u32 4, %s19
        %p198 = scmp.lt.s32.totalorder %s197, 7
        %s199 = scalar_select %p198, %s197, 7
        %s200 = smul.addr %s199, 4
        %s201 = scalar_lea.vmem %s0, %s200
        %p202 = pneg %p40
        %p203 = pneg %p37
        %p204 = pneg %p61
        %p205 = pneg %p58
        %p206 = pneg %p82
        %p207 = pneg %p79
        %p208 = pneg %p103
        %p209 = pneg %p100
        %p210 = pneg %p124
        %p211 = pneg %p121
        %p212 = pneg %p150
        %p213 = pneg %p147
        %s214 = sand.u32 %s137, 1
        %s215 = scalar_lea.sflag [#allocation3], %s214
        %s216 = sand.u32 %s137, 1
        %s217 = smul.addr %s216, 16
        %s218 = scalar_lea.vmem [#allocation2], %s217
        %s219 = smul.u32 4, %s19
        %p220 = scmp.lt.s32.totalorder %s219, 7
        %s221 = scalar_select %p220, %s219, 7
        %s222 = smul.addr %s221, 4
        %s223 = scalar_lea.vmem %s0, %s222
        %s224 = smul.u32 4, %s19
        %s225 = smul.u32 4, %s19
        %v227 = vld [vmem:[%s223] sm:$0xf]
        %v228 = vld [vmem:[%s223 + $0x4] sm:$0xf]
        %v229 = vld [vmem:[%s223 + $0x8] sm:$0xf]
        %v230 = vld [vmem:[%s223 + $0xc] sm:$0xf]
        %v231 = vld [vmem:[%s1] sm:$0xf]
        %v232 = vld [vmem:[%s1 + $0x4] sm:$0xf]
        %v233 = vld [vmem:[%s1 + $0x8] sm:$0xf]
        %v234 = vld [vmem:[%s1 + $0xc] sm:$0xf]
        %v235 = vld [vmem:[%s1 + $0x10] sm:$0xf]
        %v236 = vld [vmem:[%s1 + $0x14] sm:$0xf]
        %v237 = vld [vmem:[%s2] sm:$0x1]
        %v239 = vlaneseq
        %v240 = vshrl.u32 %v239, 7
        %v241 = vsub.s32 0, %v240
        %v242 = vrot.slane %v237, %v241
        %v248 = vunpack.c.l.b16 %v227
        %v249 = vunpack.c.l.b16 %v228
        %v250 = vunpack.c.l.b16 %v229
        %v251 = vunpack.c.l.b16 %v230
        %v252 = vpack.c.b16 %v249, %v248
        %v253 = vpack.c.b16 %v251, %v250
        %v260 = vunpack.c.l.b16 %v231
        %v261 = vunpack.c.l.b16 %v232
        %v262 = vunpack.c.l.b16 %v233
        %v263 = vunpack.c.l.b16 %v234
        %v264 = vunpack.c.l.b16 %v235
        %v265 = vunpack.c.l.b16 %v236
        %v266 = vpack.c.b16 %v261, %v260
        %v267 = vpack.c.b16 %v263, %v262
        %v268 = vpack.c.b16 %v265, %v264
        %vm272 = vcmask 392192
        %v274 = vsel %vm272, %v252, 0
        %v277 = vsel %vm272, %v253, 0
        %279 = vmatprep.subr.bf16.mxu0 0
        %280 = vmatpush1.bf16.msra.mxu0 %v266
        %281 = vmatprep.subr.bf16.mxu0 0
        %282 = vmatpush1.bf16.msra.mxu0 %v267
        %283 = vmatprep.subr.bf16.mxu0 0
        %284 = vmatpush1.bf16.msra.mxu0 %v268
        %285 = vmatprep.subr.bf16.mxu0 0
        %286 = vmatpush1.bf16.msra.mxu0 0
        %287 = vmatprep.subr.bf16.mxu0 0
        %288 = vmatpush1.bf16.msra.mxu0 0
        %289 = vmatprep.subr.bf16.mxu0 0
        %290 = vmatpush1.bf16.msra.mxu0 0
        %291 = vmatprep.subr.bf16.mxu0 0
        %292 = vmatpush1.bf16.msra.mxu0 0
        %293 = vmatprep.subr.bf16.mxu0 0
        %294 = vmatpush1.bf16.msra.mxu0 0
        %295 = vmatprep.subr.bf16.mxu0 0
        %296 = vmatpush1.bf16.msra.mxu0 0
        %297 = vmatprep.subr.bf16.mxu0 0
        %298 = vmatpush1.bf16.msra.mxu0 0
        %299 = vmatprep.subr.bf16.mxu0 0
        %300 = vmatpush1.bf16.msra.mxu0 0
        %301 = vmatprep.subr.bf16.mxu0 0
        %302 = vmatpush1.bf16.msra.mxu0 0
        %303 = vmatprep.subr.bf16.mxu0 0
        %304 = vmatpush1.bf16.msra.mxu0 0
        %305 = vmatprep.subr.bf16.mxu0 0
        %306 = vmatpush1.bf16.msra.mxu0 0
        %307 = vmatprep.subr.bf16.mxu0 0
        %308 = vmatpush1.bf16.msra.mxu0 0
        %309 = vmatprep.subr.bf16.mxu0 0
        %310 = vmatpush1.bf16.msra.mxu0 0
        %311 = vmatprep.mubr.bf16.mxu0 0
        %312 = vmatmul.mubr.bf16.gmra.mrb[0].mxu0 %v274
        %v313 = vpop.f32.mrb[0].mxu0
        %v314 = vadd.f32 %v242, %v313
        %v315 = vpop.f32.mrb[0].mxu0
        %v316 = vpop.f32.mrb[0].mxu0
        %v317 = vadd.f32 %v242, %v316
        %v318 = vpop.f32.mrb[0].mxu0
        %319 = vmatprep.mubr.bf16.mxu0 0
        %320 = vmatmul.mubr.bf16.gmra.mrb[0].mxu0 %v277
        %v321 = vpop.f32.mrb[0].mxu0
        %v322 = vadd.f32 %v242, %v321
        %v323 = vpop.f32.mrb[0].mxu0
        %v324 = vpop.f32.mrb[0].mxu0
        %v325 = vadd.f32 %v242, %v324
        %v326 = vpop.f32.mrb[0].mxu0
        %327 = vdwg.mxu0
        %328 = vadd.xlane.f32.xlu0 %v314
        %v329 = vpop.xlane.xlu0 %328
        %330 = vadd.xlane.f32.xlu0 %v317
        %v331 = vpop.xlane.xlu0 %330
        %332 = vadd.xlane.f32.xlu0 %v322
        %v333 = vpop.xlane.xlu0 %332
        %334 = vadd.xlane.f32.xlu0 %v325
        %v335 = vpop.xlane.xlu0 %334
        %v336 = vmul.f32 %v329, 0.0078125
        %v337 = vmul.f32 %v331, 0.0078125
        %v338 = vmul.f32 %v333, 0.0078125
        %v339 = vmul.f32 %v335, 0.0078125
        %v340 = vmul.f32 %v314, %v314
        %v341 = vmul.f32 %v317, %v317
        %v342 = vmul.f32 %v322, %v322
        %v343 = vmul.f32 %v325, %v325
        %344 = vadd.xlane.f32.xlu0 %v340
        %v345 = vpop.xlane.xlu0 %344
        %346 = vadd.xlane.f32.xlu0 %v341
        %v347 = vpop.xlane.xlu0 %346
        %348 = vadd.xlane.f32.xlu0 %v342
        %v349 = vpop.xlane.xlu0 %348
        %350 = vadd.xlane.f32.xlu0 %v343
        %v351 = vpop.xlane.xlu0 %350
        %v352 = vmul.f32 %v345, 0.0078125
        %v353 = vmul.f32 %v347, 0.0078125
        %v354 = vmul.f32 %v349, 0.0078125
        %v355 = vmul.f32 %v351, 0.0078125
        %v356 = vmul.f32 %v336, %v336
        %v357 = vmul.f32 %v337, %v337
        %v358 = vmul.f32 %v338, %v338
        %v359 = vmul.f32 %v339, %v339
        %v360 = vsub.f32 %v352, %v356
        %v361 = vsub.f32 %v353, %v357
        %v362 = vsub.f32 %v354, %v358
        %v363 = vsub.f32 %v355, %v359
        %v364 = vmax.f32 %v360, 0.0
        %v365 = vmax.f32 %v361, 0.0
        %v366 = vmax.f32 %v362, 0.0
        %v367 = vmax.f32 %v363, 0.0
        %v368 = vadd.f32 %v364, 1e-05
        %v369 = vadd.f32 %v365, 1e-05
        %v370 = vadd.f32 %v366, 1e-05
        %v371 = vadd.f32 %v367, 1e-05
        %v372 = vrsqrt.pop %v368
        %v373 = vrsqrt.pop %v369
        %v374 = vrsqrt.pop %v370
        %v375 = vrsqrt.pop %v371
        %v376 = vsub.f32 %v314, %v336
        %v377 = vsub.f32 %v317, %v337
        %v378 = vsub.f32 %v322, %v338
        %v379 = vsub.f32 %v325, %v339
        %v380 = vmul.f32 %v376, %v372
        %v381 = vmul.f32 %v377, %v373
        %v382 = vmul.f32 %v378, %v374
        %v383 = vmul.f32 %v379, %v375
        %v384 = vld [vmem:[%s3] sm:$0x1]
        %v386 = vlaneseq
        %v387 = vshrl.u32 %v386, 7
        %v388 = vsub.s32 0, %v387
        %v389 = vrot.slane %v384, %v388
        %v391 = vmul.f32 %v380, %v389
        %v392 = vmul.f32 %v381, %v389
        %v393 = vmul.f32 %v382, %v389
        %v394 = vmul.f32 %v383, %v389
        %v395 = vld [vmem:[%s4] sm:$0x1]
        %v397 = vlaneseq
        %v398 = vshrl.u32 %v397, 7
        %v399 = vsub.s32 0, %v398
        %v400 = vrot.slane %v395, %v399
        %v402 = vadd.f32 %v391, %v400
        %v403 = vadd.f32 %v392, %v400
        %v404 = vadd.f32 %v393, %v400
        %v405 = vadd.f32 %v394, %v400
        %v406 = vpack.c.bf16 %v403, %v402
        %v407 = vpack.c.bf16 %v405, %v404
        %v410 = vunpack.c.l.b16 %v406
        %v411 = vunpack.c.h.b16 %v406
        %v412 = vunpack.c.l.b16 %v407
        %v413 = vunpack.c.h.b16 %v407
        %v414 = vpack.c.b16 %v410, %v410
        %v415 = vpack.c.b16 %v411, %v411
        %v416 = vpack.c.b16 %v412, %v412
        %v417 = vpack.c.b16 %v413, %v413
        %422 = vst [vmem:[%s218] sm:$0xf] %v414
        %423 = vst [vmem:[%s218 + $0x4] sm:$0xf] %v415
        %424 = vst [vmem:[%s218 + $0x8] sm:$0xf] %v416
        %425 = vst [vmem:[%s218 + $0xc] sm:$0xf] %v417
        %s426 = sand.u32 %s137, 1
        %s427 = scalar_lea.sflag [#allocation3], %s426
        %s428 = sand.u32 %s137, 1
        %s429 = smul.addr %s428, 16
        %s430 = scalar_lea.vmem [#allocation2], %s429
        // Predicated region
        $region41: #{tpu_custom_call.1} parent=39 // pred_check
          %p431 = pneg %p147
        $region42: #{tpu_custom_call.1} parent=39 // pred_check_branch
          %433 = sbr.rel (%p431) target = $region44
        $region43: #{tpu_custom_call.1} parent=39 // pred_region
          %s434 = smul.u32 4, %s19
          %s436 = ssub.s32 256, 256
          %437 = vsyncadd %s427, %s436
          %s438 = smul.addr %s434, 64
          %s439 = scalar_lea.hbm %s5, %s438
          %s440 = sshll.u32 %s430, 4
          %s441 = int_to_ptr.vmem [resolvable:$true] %s440
          %446 = dma.vmem_to_hbm [thread:$0]  %s441, 256, %s439, %s427, 64, 64, 4
        $region44: #{tpu_custom_call.1} parent=39 // pred_fallthru
          _
      $region40: #{tpu_custom_call.1} parent=5 // pred_fallthru
        _
      %p447 = scmp.le.s32.totalorder 2, %s14
      // Predicated region
      $region45: #{tpu_custom_call.1} parent=5 // pred_check
        %p448 = pneg %p447
      $region46: #{tpu_custom_call.1} parent=5 // pred_check_branch
        %450 = sbr.rel (%p448) target = $region48
      $region47: #{tpu_custom_call.1} parent=5 // pred_region
        %s451 = ssub.s32 %s14, 2
        // Predicated region
        $region49: #{tpu_custom_call.1} parent=47 // pred_check
          %p452 = pneg %p153
        $region50: #{tpu_custom_call.1} parent=47 // pred_check_branch
          %454 = sbr.rel (%p452) target = $region52
        $region51: #{tpu_custom_call.1} parent=47 // pred_region
          %s455 = sand.u32 %s138, 1
          %s456 = scalar_lea.sflag [#allocation3], %s455
          %s457 = sand.u32 %s138, 1
          %s458 = smul.addr %s457, 16
          %s459 = scalar_lea.vmem [#allocation2], %s458
          %460 = dma.done %s456, 256
        $region52: #{tpu_custom_call.1} parent=47 // pred_fallthru
          _
      $region48: #{tpu_custom_call.1} parent=5 // pred_fallthru
        _
    $region6: #{tpu_custom_call.1} parent=1 // loop_footer
      %s18 = sadd.s32 1, %s14
    $region7: #{tpu_custom_call.1} parent=1 // loop_footer_branch
      %13 = sbr.rel target = $region3
    $region8: #{tpu_custom_call.1} parent=1 // loop_exit
      _
    %461 = vsyncpa [#allocation3], 1
    %s462 = scalar_lea.sflag [#allocation3], 1
    %463 = vsyncpa %s462, 1

</llo_original>
